<compile_context>
chip_gen: v7x
topology: tpu7x:2x2x1
jax: 0.10.0
libtpu: 0.0.40
codegen_flags: <defaults>
</compile_context>

<pallas_src>
import numpy as np
import jax
import jax.numpy as jnp
from jax.experimental import pallas as pl
from jax.experimental.pallas import tpu as pltpu

BN_EPS = 1e-5


def _bilinear_interp_matrix(out_size: int, in_size: int) -> np.ndarray:
    """1-D bilinear interpolation matrix, align_corners=True (PyTorch F.upsample)."""
    A = np.zeros((out_size, in_size), dtype=np.float32)
    if in_size == 1 or out_size == 1:
        if out_size == 1:
            A[0, 0] = 1.0
        else:
            A[:, 0] = 1.0
        return A
    scale = (in_size - 1) / (out_size - 1)
    for i in range(out_size):
        src = i * scale
        i0 = int(np.floor(src))
        i1 = min(i0 + 1, in_size - 1)
        w1 = float(src - i0)
        A[i, i0] += 1.0 - w1
        A[i, i1] += w1
    return A


def _vmem_budget_bytes() -> int:
    """Per-generation VMEM budget with headroom (48 MiB on 64-MiB parts, else 96 MiB)."""
    cap = 128 << 20
    try:
        info = pltpu.get_tpu_info()
        cap = int(getattr(info, "vmem_capacity_bytes", cap) or cap)
    except Exception:
        pass
    if cap <= (64 << 20):          # v7x: 64 MiB physical per TC -> leave headroom
        return 48 << 20
    return 96 << 20                # v5e / v6e: 128 MiB physical


def _pick_tile_h(H: int, W: int, max_tile_hw: int) -> int:
    """Largest row-tile with tile_h*W <= max_tile_hw and tile_h*W % 128 == 0."""
    for th in range(H, 0, -1):
        if H % th:
            continue
        if th == H and H * W <= max_tile_hw:
            return th
        if (th * W) % 128 == 0 and th * W <= max_tile_hw:
            return th
    return H  # fall back to the full spatial extent (always a legal block)


def _grid_attn_kernel(x_ref, g_ref, uT_ref, wa_ref, wp_ref, bp_ref,
                      wpsi_ref, bpsi_ref, bc1_ref, out_ref):
    # Block shapes (one (batch, spatial-tile) grid point):
    #   x_ref  : (1, Ci, T)       g_ref  : (1, Cg, HgWg)
    #   uT_ref : (HgWg, T)        wa_ref : (2*Cm_pad, Ci)
    x = x_ref[0]                                   # (Ci, T)
    g = g_ref[0]                                   # (Cg, HgWg)
    Cm = wp_ref.shape[0]
    Cm_pad = wa_ref.shape[0] // 2

    # Stacked theta(x) + BN-folded conv1(x): ONE MXU matmul with 2*Cm_pad rows.
    a = jnp.dot(wa_ref[...], x, preferred_element_type=jnp.float32)   # (2*Cm_pad, T)
    theta_x = a[:Cm]                               # (Cm, T)
    pre = a[Cm_pad:Cm_pad + Cm]                    # (Cm, T)  conv1(x) before gating

    # phi(g): 1x1 conv + bias -> (Cm, HgWg) (tiny; recomputed per spatial tile).
    phi = jnp.dot(wp_ref[...], g, preferred_element_type=jnp.float32) + bp_ref[...]

    # Bilinear upsample (align_corners=True) of phi for this spatial tile as one
    # 2-D MXU matmul against the per-tile Kronecker interpolation matrix.
    phi_up = jnp.dot(phi.astype(uT_ref.dtype), uT_ref[...],
                     preferred_element_type=jnp.float32)              # (Cm, T)

    # f = relu(theta_x + upsample(phi_g))
    f = jnp.maximum(theta_x + phi_up, 0.0)

    # psi(f): 1x1 conv Cm -> 1 as VPU multiply + sublane reduce; sigmoid on EUP.
    psi = jnp.sum(f * wpsi_ref[...], axis=0, keepdims=True) + bpsi_ref[...]   # (1, T)
    attn = jax.nn.sigmoid(psi)

    # conv1(attn*x) == (conv1 @ x) * attn + bias  (attn broadcasts over channels)
    out_ref[0] = (pre * attn + bc1_ref[...]).astype(out_ref.dtype)


def grid_attention_block_2d(x_nchw, g_nchw, params, *, tile_h=None,
                            storage_dtype=jnp.float32, out_dtype=jnp.float32):
    """GridAttentionBlock2D forward. x_nchw: (B,Ci,H,W), g_nchw: (B,Cg,Hg,Wg)."""
    B, Ci, H, W = x_nchw.shape
    Bg, Cg, Hg, Wg = g_nchw.shape
    assert B == Bg
    Cm = params["w_theta"].shape[0]
    Cm_pad = ((Cm + 7) // 8) * 8
    HW, HgWg = H * W, Hg * Wg

    isz = int(jnp.dtype(storage_dtype).itemsize)
    osz = int(jnp.dtype(out_dtype).itemsize)

    # ---- VMEM budget -> tile size ------------------------------------------
    budget = _vmem_budget_bytes()
    per_col = (2 * Ci + 2 * HgWg) * isz + 2 * Cm * osz \
        + 4 * (2 * Cm_pad + 3 * Cm + 2)                       # f32 intermediates
    fixed = 2 * (2 * Cm_pad * Ci + Cm * Cg) * isz + 2 * Cg * HgWg * isz \
        + 4 * Cm * HgWg + 4 * (3 * Cm + 2)
    avail = max(budget - fixed - (4 << 20), 1 << 20)
    max_tile_hw = int(max(128, min(avail // per_col, 16384)))

    if tile_h is None:
        tile_h = _pick_tile_h(H, W, max_tile_hw)
    assert H % tile_h == 0
    T = tile_h * W
    n_s = H // tile_h

    # ---- inputs: channels-first, spatially flattened (reshapes only) --------
    # On v5e/v6e/v7x pass storage_dtype=jnp.bfloat16 to halve read DMA bytes;
    # accumulation stays f32 via preferred_element_type.
    x = x_nchw.reshape(B, Ci, HW).astype(storage_dtype)
    g = g_nchw.reshape(B, Cg, HgWg).astype(storage_dtype)

    # Per-tile Kronecker bilinear interpolation matrix (align_corners=True):
    #   U[h*W+w, p*Wg+q] = Ah[h,p] * Aw[w,q];  kernel uses U^T blocks (HgWg, T).
    Ah = _bilinear_interp_matrix(H, Hg)                       # (H, Hg)
    Aw = _bilinear_interp_matrix(W, Wg)                       # (W, Wg)
    UT = jnp.asarray(np.kron(Ah, Aw).T.astype(np.float32)).astype(storage_dtype)

    # Fold eval-mode BatchNorm into conv1, then stack [theta; conv1] so one
    # matmul produces both; pad each half to a multiple of 8 rows for aligned
    # result slicing (zero rows cost nothing at real channel counts).
    inv_std = 1.0 / jnp.sqrt(params["bn_var"] + BN_EPS)       # (Cm,)
    scale = params["bn_gamma"] * inv_std
    w_c1_eff = scale[:, None] * params["w_c1"]                # (Cm, Ci)
    b_c1_eff = (params["bn_beta"] - params["bn_mean"] * scale)[:, None]
    b_c1_eff = b_c1_eff.astype(jnp.float32)                   # (Cm, 1)

    wa = jnp.zeros((2 * Cm_pad, Ci), jnp.float32)
    wa = wa.at[:Cm].set(params["w_theta"])
    wa = wa.at[Cm_pad:Cm_pad + Cm].set(w_c1_eff)
    wa = wa.astype(storage_dtype)

    w_phi = params["w_phi"].astype(storage_dtype)             # (Cm, Cg)
    b_phi = params["b_phi"][:, None].astype(jnp.float32)      # (Cm, 1)
    w_psi = params["w_psi"][:, None].astype(jnp.float32)      # (Cm, 1)
    b_psi = jnp.reshape(params["b_psi"], (1, 1)).astype(jnp.float32)

    full = lambda shape: pl.BlockSpec(shape, lambda b, s: (0,) * len(shape))

    # Advisory cost estimate (g + U are re-fetched once per batch, weights once).
    flops = int(2 * B * HW * (2 * Cm_pad) * Ci                # stacked theta+conv1
                + 2 * B * n_s * Cm * Cg * HgWg                # phi 1x1 conv (per tile)
                + 2 * B * HW * Cm * HgWg                      # Kronecker upsample
                + B * HW * (5 * Cm + 4))                      # relu/psi/gating VPU
    bytes_accessed = int(B * Ci * HW * isz + B * Cm * HW * osz
                         + B * Cg * HgWg * isz + B * HgWg * HW * isz
                         + (2 * Cm_pad * Ci + Cm * Cg) * isz + 4 * (3 * Cm + 2))
    cost = pl.CostEstimate(flops=flops, transcendentals=int(B * HW),
                           bytes_accessed=bytes_accessed)

    needed = T * per_col + fixed
    vmem_limit = int(min(budget, max(2 * needed, 16 << 20)))

    out = pl.pallas_call(
        _grid_attn_kernel,
        out_shape=jax.ShapeDtypeStruct((B, Cm, HW), out_dtype),
        grid=(B, n_s),
        in_specs=[
            # NOTE: if the x DMA is exposed at large T, pipeline_mode=pl.Buffered(3)
            # on this spec is the next lever (budget the extra Ci*T buffer on v7x).
            pl.BlockSpec((1, Ci, T), lambda b, s: (b, 0, s)),      # x tile
            pl.BlockSpec((1, Cg, HgWg), lambda b, s: (b, 0, 0)),   # g (whole, small)
            pl.BlockSpec((HgWg, T), lambda b, s: (0, s)),          # U^T tile (upsample)
            full((2 * Cm_pad, Ci)),                                # [w_theta; w_c1_eff]
            full((Cm, Cg)),                                        # w_phi
            full((Cm, 1)),                                         # b_phi
            full((Cm, 1)),                                         # w_psi
            full((1, 1)),                                          # b_psi
            full((Cm, 1)),                                         # b_c1 (BN folded)
        ],
        out_specs=pl.BlockSpec((1, Cm, T), lambda b, s: (b, 0, s)),
        compiler_params=pltpu.CompilerParams(
            dimension_semantics=("parallel", "parallel"),
            vmem_limit_bytes=vmem_limit),
        cost_estimate=cost,
    )(x, g, UT, wa, w_phi, b_phi, w_psi, b_psi, b_c1_eff)

    return out.reshape(B, Cm, H, W)


def _reference(x, g, Ah, Aw, p):
    """Pure-JAX reference in NCHW, eval-mode BN (not folded)."""
    theta = jnp.einsum('mc,bchw->bmhw', p["w_theta"], x)
    phi = jnp.einsum('mc,bchw->bmhw', p["w_phi"], g) + p["b_phi"][None, :, None, None]
    phi_up = jnp.einsum('hp,wq,bmpq->bmhw', Ah, Aw, phi)
    f = jnp.maximum(theta + phi_up, 0.0)
    psi = jnp.einsum('m,bmhw->bhw', p["w_psi"], f) + p["b_psi"]
    attn = jax.nn.sigmoid(psi)[:, None]
    y = attn * x
    z = jnp.einsum('mc,bchw->bmhw', p["w_c1"], y)
    inv = (1.0 / jnp.sqrt(p["bn_var"] + BN_EPS))[None, :, None, None]
    return ((z - p["bn_mean"][None, :, None, None]) * inv
            * p["bn_gamma"][None, :, None, None] + p["bn_beta"][None, :, None, None])


if __name__ == "__main__":
    # Module config: in_channels=4, gating_channels=8 -> inter_channels = 4 // 2 = 2
    B, Ci, Cg, H, W, Hg, Wg = 2, 4, 8, 16, 16, 8, 8
    Cm = max(Ci // 2, 1)

    key = jax.random.PRNGKey(0)
    ks = jax.random.split(key, 12)

    params = {
        "w_theta": 0.1 * jax.random.normal(ks[0], (Cm, Ci), jnp.float32),
        "w_phi":   0.1 * jax.random.normal(ks[1], (Cm, Cg), jnp.float32),
        "b_phi":   0.1 * jax.random.normal(ks[2], (Cm,), jnp.float32),
        "w_psi":   0.1 * jax.random.normal(ks[3], (Cm,), jnp.float32),
        "b_psi":   0.1 * jax.random.normal(ks[4], (), jnp.float32),
        "w_c1":    0.1 * jax.random.normal(ks[5], (Cm, Ci), jnp.float32),
        "bn_gamma": 1.0 + 0.1 * jax.random.normal(ks[6], (Cm,), jnp.float32),
        "bn_beta":  0.1 * jax.random.normal(ks[7], (Cm,), jnp.float32),
        "bn_mean":  0.1 * jax.random.normal(ks[8], (Cm,), jnp.float32),
        "bn_var":   jnp.abs(1.0 + 0.1 * jax.random.normal(ks[9], (Cm,), jnp.float32)),
    }

    x_nchw = jax.random.normal(ks[10], (B, Ci, H, W), jnp.float32)
    g_nchw = jax.random.normal(ks[11], (B, Cg, Hg, Wg), jnp.float32)

    out_nchw = grid_attention_block_2d(x_nchw, g_nchw, params)
    out_nchw = jax.block_until_ready(out_nchw)

    Ah = jnp.asarray(_bilinear_interp_matrix(H, Hg))
    Aw = jnp.asarray(_bilinear_interp_matrix(W, Wg))
    ref_nchw = _reference(x_nchw, g_nchw, Ah, Aw, params)

    assert out_nchw.shape == (B, Cm, H, W)
    np.testing.assert_allclose(np.asarray(out_nchw), np.asarray(ref_nchw),
                               rtol=2e-5, atol=2e-5)
    print("KERNEL_OK")
</pallas_src>

<mosaic_0001>
module attributes {stable_mosaic.version = 11 : i64} {
  func.func @_grid_attn_kernel(%arg0: i32, %arg1: i32, %arg2: memref<1x4x256xf32, #tpu.memory_space<vmem>>, %arg3: memref<1x8x64xf32, #tpu.memory_space<vmem>>, %arg4: memref<64x256xf32, #tpu.memory_space<vmem>>, %arg5: memref<16x4xf32, #tpu.memory_space<vmem>>, %arg6: memref<2x8xf32, #tpu.memory_space<vmem>>, %arg7: memref<2x1xf32, #tpu.memory_space<vmem>>, %arg8: memref<2x1xf32, #tpu.memory_space<vmem>>, %arg9: memref<1x1xf32, #tpu.memory_space<vmem>>, %arg10: memref<2x1xf32, #tpu.memory_space<vmem>>, %arg11: memref<1x2x256xf32, #tpu.memory_space<vmem>>) attributes {dimension_semantics = [#tpu.dimension_semantics<parallel>, #tpu.dimension_semantics<parallel>], iteration_bounds = array<i64: 2, 1>, scalar_prefetch = 0 : i64, scratch_operands = 0 : i64, tpu.core_type = #tpu.core_type<tc>, window_params = [{transform_indices = @transform_0, window_bounds = array<i64: 1, 4, 256>}, {transform_indices = @transform_1, window_bounds = array<i64: 1, 8, 64>}, {transform_indices = @transform_2, window_bounds = array<i64: 64, 256>}, {pipeline_mode = #tpu.pipeline_mode<synchronous>, transform_indices = @transform_3, window_bounds = array<i64: 16, 4>}, {pipeline_mode = #tpu.pipeline_mode<synchronous>, transform_indices = @transform_4, window_bounds = array<i64: 2, 8>}, {pipeline_mode = #tpu.pipeline_mode<synchronous>, transform_indices = @transform_5, window_bounds = array<i64: 2, 1>}, {pipeline_mode = #tpu.pipeline_mode<synchronous>, transform_indices = @transform_6, window_bounds = array<i64: 2, 1>}, {pipeline_mode = #tpu.pipeline_mode<synchronous>, transform_indices = @transform_7, window_bounds = array<i64: 1, 1>}, {pipeline_mode = #tpu.pipeline_mode<synchronous>, transform_indices = @transform_8, window_bounds = array<i64: 2, 1>}, {transform_indices = @transform_9, window_bounds = array<i64: 1, 2, 256>}]} {
    %c0 = arith.constant 0 : index
    %c0_0 = arith.constant 0 : index
    %c0_1 = arith.constant 0 : index
    %0 = vector.load %arg2[%c0, %c0_0, %c0_1] : memref<1x4x256xf32, #tpu.memory_space<vmem>>, vector<1x4x256xf32>
    %1 = vector.shape_cast %0 : vector<1x4x256xf32> to vector<4x256xf32>
    %c0_2 = arith.constant 0 : index
    %c0_3 = arith.constant 0 : index
    %c0_4 = arith.constant 0 : index
    %2 = vector.load %arg3[%c0_2, %c0_3, %c0_4] : memref<1x8x64xf32, #tpu.memory_space<vmem>>, vector<1x8x64xf32>
    %3 = vector.shape_cast %2 : vector<1x8x64xf32> to vector<8x64xf32>
    %c0_5 = arith.constant 0 : index
    %c0_6 = arith.constant 0 : index
    %4 = vector.load %arg5[%c0_5, %c0_6] : memref<16x4xf32, #tpu.memory_space<vmem>>, vector<16x4xf32>
    %cst = arith.constant dense<0.000000e+00> : vector<16x256xf32>
    %5 = tpu.matmul %4, %1, %cst {dimension_numbers = #tpu.dot_dimension_numbers<[1], [0], [0], [1], [0, 0, 1, 1], [], []>} : vector<16x4xf32>, vector<4x256xf32>, vector<16x256xf32> -> vector<16x256xf32>
    %6 = vector.extract_strided_slice %5 {offsets = [0, 0], sizes = [2, 256], strides = [1, 1]} : vector<16x256xf32> to vector<2x256xf32>
    %7 = vector.extract_strided_slice %5 {offsets = [8, 0], sizes = [2, 256], strides = [1, 1]} : vector<16x256xf32> to vector<2x256xf32>
    %c0_7 = arith.constant 0 : index
    %c0_8 = arith.constant 0 : index
    %8 = vector.load %arg6[%c0_7, %c0_8] : memref<2x8xf32, #tpu.memory_space<vmem>>, vector<2x8xf32>
    %cst_9 = arith.constant dense<0.000000e+00> : vector<2x64xf32>
    %9 = tpu.matmul %8, %3, %cst_9 {dimension_numbers = #tpu.dot_dimension_numbers<[1], [0], [0], [1], [0, 0, 1, 1], [], []>} : vector<2x8xf32>, vector<8x64xf32>, vector<2x64xf32> -> vector<2x64xf32>
    %c0_10 = arith.constant 0 : index
    %c0_11 = arith.constant 0 : index
    %10 = vector.load %arg7[%c0_10, %c0_11] : memref<2x1xf32, #tpu.memory_space<vmem>>, vector<2x1xf32>
    %11 = vector.broadcast %10 : vector<2x1xf32> to vector<2x64xf32>
    %12 = arith.addf %9, %11 : vector<2x64xf32>
    %c0_12 = arith.constant 0 : index
    %c0_13 = arith.constant 0 : index
    %13 = vector.load %arg4[%c0_12, %c0_13] : memref<64x256xf32, #tpu.memory_space<vmem>>, vector<64x256xf32>
    %cst_14 = arith.constant dense<0.000000e+00> : vector<2x256xf32>
    %14 = tpu.matmul %12, %13, %cst_14 {dimension_numbers = #tpu.dot_dimension_numbers<[1], [0], [0], [1], [0, 0, 1, 1], [], []>} : vector<2x64xf32>, vector<64x256xf32>, vector<2x256xf32> -> vector<2x256xf32>
    %15 = arith.addf %6, %14 : vector<2x256xf32>
    %cst_15 = arith.constant 0.000000e+00 : f32
    %16 = vector.broadcast %cst_15 : f32 to vector<2x256xf32>
    %17 = arith.maximumf %15, %16 : vector<2x256xf32>
    %c0_16 = arith.constant 0 : index
    %c0_17 = arith.constant 0 : index
    %18 = vector.load %arg8[%c0_16, %c0_17] : memref<2x1xf32, #tpu.memory_space<vmem>>, vector<2x1xf32>
    %19 = vector.broadcast %18 : vector<2x1xf32> to vector<2x256xf32>
    %20 = arith.mulf %17, %19 : vector<2x256xf32>
    %cst_18 = arith.constant dense<0.000000e+00> : vector<256xf32>
    %21 = vector.multi_reduction <add>, %20, %cst_18 [0] : vector<2x256xf32> to vector<256xf32>
    %22 = vector.shape_cast %21 : vector<256xf32> to vector<1x256xf32>
    %c0_19 = arith.constant 0 : index
    %c0_20 = arith.constant 0 : index
    %23 = vector.load %arg9[%c0_19, %c0_20] : memref<1x1xf32, #tpu.memory_space<vmem>>, vector<1x1xf32>
    %24 = vector.broadcast %23 : vector<1x1xf32> to vector<1x256xf32>
    %25 = arith.addf %22, %24 : vector<1x256xf32>
    %26 = arith.negf %25 : vector<1x256xf32>
    %27 = math.exp %26 : vector<1x256xf32>
    %cst_21 = arith.constant 1.000000e+00 : f32
    %28 = vector.broadcast %cst_21 : f32 to vector<1x256xf32>
    %29 = arith.addf %28, %27 : vector<1x256xf32>
    %30 = arith.divf %28, %29 : vector<1x256xf32>
    %31 = vector.broadcast %30 : vector<1x256xf32> to vector<2x256xf32>
    %32 = arith.mulf %7, %31 : vector<2x256xf32>
    %c0_22 = arith.constant 0 : index
    %c0_23 = arith.constant 0 : index
    %33 = vector.load %arg10[%c0_22, %c0_23] : memref<2x1xf32, #tpu.memory_space<vmem>>, vector<2x1xf32>
    %34 = vector.broadcast %33 : vector<2x1xf32> to vector<2x256xf32>
    %35 = arith.addf %32, %34 : vector<2x256xf32>
    %c0_24 = arith.constant 0 : index
    %c0_25 = arith.constant 0 : index
    %c0_26 = arith.constant 0 : index
    %36 = vector.load %arg11[%c0_24, %c0_25, %c0_26] : memref<1x2x256xf32, #tpu.memory_space<vmem>>, vector<1x2x256xf32>
    %37 = vector.shape_cast %36 : vector<1x2x256xf32> to vector<2x256xf32>
    %38 = vector.shape_cast %35 : vector<2x256xf32> to vector<1x2x256xf32>
    tpu.vector_store %arg11[%c0_24, %c0_25, %c0_26], %38 {strides = array<i32>} : memref<1x2x256xf32, #tpu.memory_space<vmem>>, vector<1x2x256xf32>,
    return
  }
  func.func @transform_0(%arg0: i32, %arg1: i32) -> (i32, i32, i32) {
    %c0_i32 = arith.constant 0 : i32
    %c0_i32_0 = arith.constant 0 : i32
    return %arg0, %c0_i32, %arg1 : i32, i32, i32
  }
  func.func @transform_1(%arg0: i32, %arg1: i32) -> (i32, i32, i32) {
    %c0_i32 = arith.constant 0 : i32
    %c0_i32_0 = arith.constant 0 : i32
    %c0_i32_1 = arith.constant 0 : i32
    return %arg0, %c0_i32, %c0_i32_0 : i32, i32, i32
  }
  func.func @transform_2(%arg0: i32, %arg1: i32) -> (i32, i32) {
    %c0_i32 = arith.constant 0 : i32
    %c0_i32_0 = arith.constant 0 : i32
    return %c0_i32, %arg1 : i32, i32
  }
  func.func @transform_3(%arg0: i32, %arg1: i32) -> (i32, i32) {
    %c0_i32 = arith.constant 0 : i32
    %c0_i32_0 = arith.constant 0 : i32
    %c0_i32_1 = arith.constant 0 : i32
    return %c0_i32, %c0_i32_0 : i32, i32
  }
  func.func @transform_4(%arg0: i32, %arg1: i32) -> (i32, i32) {
    %c0_i32 = arith.constant 0 : i32
    %c0_i32_0 = arith.constant 0 : i32
    %c0_i32_1 = arith.constant 0 : i32
    return %c0_i32, %c0_i32_0 : i32, i32
  }
  func.func @transform_5(%arg0: i32, %arg1: i32) -> (i32, i32) {
    %c0_i32 = arith.constant 0 : i32
    %c0_i32_0 = arith.constant 0 : i32
    %c0_i32_1 = arith.constant 0 : i32
    return %c0_i32, %c0_i32_0 : i32, i32
  }
  func.func @transform_6(%arg0: i32, %arg1: i32) -> (i32, i32) {
    %c0_i32 = arith.constant 0 : i32
    %c0_i32_0 = arith.constant 0 : i32
    %c0_i32_1 = arith.constant 0 : i32
    return %c0_i32, %c0_i32_0 : i32, i32
  }
  func.func @transform_7(%arg0: i32, %arg1: i32) -> (i32, i32) {
    %c0_i32 = arith.constant 0 : i32
    %c0_i32_0 = arith.constant 0 : i32
    %c0_i32_1 = arith.constant 0 : i32
    return %c0_i32, %c0_i32_0 : i32, i32
  }
  func.func @transform_8(%arg0: i32, %arg1: i32) -> (i32, i32) {
    %c0_i32 = arith.constant 0 : i32
    %c0_i32_0 = arith.constant 0 : i32
    %c0_i32_1 = arith.constant 0 : i32
    return %c0_i32, %c0_i32_0 : i32, i32
  }
  func.func @transform_9(%arg0: i32, %arg1: i32) -> (i32, i32, i32) {
    %c0_i32 = arith.constant 0 : i32
    %c0_i32_0 = arith.constant 0 : i32
    return %arg0, %c0_i32, %arg1 : i32, i32, i32
  }
}

</mosaic_0001>

<llo_original>
// kernel: tpu_custom_call.1
$region0: #{tpu_custom_call.1}
  #allocation0 [shape = 'u32[]', space=smem, size = 0x4, offset = 0x4, fixed_abs, tag = 'smem constant byte address 0x4 - core index']
  #allocation1 [shape = 'u32[144,128]{1,0:T(1,128)}', space=vmem, size = 0x12000, scoped, tag = 'internal scratch']
  #allocation2 [shape = 'f32[1,1]{1,0:T(1,128)S(1)}', space=vmem, size = 0x200, scoped, tag = 'scoped memory for tpu_custom_call.1']
  %s0 = inlined_call_operand.vmem [shape: f32[2,4,256], index: 0, kind: input, shape index: {}]
  %s1 = inlined_call_operand.vmem [shape: f32[2,8,64], index: 1, kind: input, shape index: {}]
  %s2 = inlined_call_operand.hbm [shape: f32[64,256], index: 2, kind: input, shape index: {}]
  %s3 = inlined_call_operand.vmem [shape: f32[16,4], index: 3, kind: input, shape index: {}]
  %s4 = inlined_call_operand.vmem [shape: f32[2,8], index: 4, kind: input, shape index: {}]
  %s5 = inlined_call_operand.vmem [shape: f32[2,1], index: 5, kind: input, shape index: {}]
  %s6 = inlined_call_operand.vmem [shape: f32[2,1], index: 6, kind: input, shape index: {}]
  %s7 = inlined_call_operand.<no memory space> [shape: f32[1,1], index: 7, kind: input, shape index: {}]
  %s8 = inlined_call_operand.vmem [shape: f32[2,1], index: 8, kind: input, shape index: {}]
  %s9 = inlined_call_operand.hbm [shape: f32[2,2,256], index: 9, kind: output, shape index: {}]
  %s10 = sld [smem:[#allocation0]]
  $region73: #{tpu_custom_call.1} parent=0
    _
  %s12 = ssub.s32 1, %s10
  %s13 = scalar_select 0, %s12, %s10
  %v14 = vstv %s7
  %15 = vst [vmem:[#allocation2] sm:$0x1] %v14
  $region1: #{tpu_custom_call.1} parent=0
    #allocation3 [shape = 'u8[65536]{0}', space=vmem, size = 0x10000, scoped, tag = 'input window, operand 2, single buffered']
    #allocation4 [shape = 's32[2]{0}', space=sflag, size = 0x8, scoped, tag = 'scoped memory for tpu_custom_call.1']
    #allocation5 [shape = 's32[2]{0}', space=sflag, size = 0x8, scoped, tag = 'scoped memory for tpu_custom_call.1']
    #allocation6 [shape = 'u8[4096]{0}', space=vmem, size = 0x1000, scoped, tag = 'output window, operand 0']
    %16 = vsyncpa [#allocation4], 0
    %17 = vsyncpa [#allocation5], 0
    %s18 = scalar_lea.sflag [#allocation5], 1
    %19 = vsyncpa %s18, 0
    loop: start=0, step=1, limit=4
    $region2: #{tpu_custom_call.1} parent=1 // loop_pre_header
      _
    $region3: #{tpu_custom_call.1} parent=1 // loop_header
      %s21 = sphi 0, %s25
      %p22 = scmp.ge.s32.totalorder %s21, 4
      %s28 = sphi 0, %s40
      %s29 = sphi 0, %s36
      %s30 = sphi 0, %s28
      %s31 = sphi 0, %s29
      %s32 = sphi 0, %s30
      %s33 = sphi 0, %s31
      %s45 = sphi 0, %s47
      %s48 = sphi 0, %s45
      %s49 = sphi 0, %s48
      %s65 = sphi 0, %s49
      %s71 = sphi 0, %s73
      %s74 = sphi 0, %s71
      %s75 = sphi 0, %s74
      %s91 = sphi 0, %s75
      %s97 = sphi 0, %s99
      %s100 = sphi 0, %s97
      %s101 = sphi 0, %s100
      %s117 = sphi 0, %s101
      %s121 = sphi 0, %s121
      %s123 = sphi 0, %s121
      %s124 = sphi 0, %s123
      %s138 = sphi 0, %s124
      %s142 = sphi 0, %s142
      %s144 = sphi 0, %s142
      %s145 = sphi 0, %s144
      %s159 = sphi 0, %s145
      %s163 = sphi 0, %s163
      %s165 = sphi 0, %s163
      %s166 = sphi 0, %s165
      %s180 = sphi 0, %s166
      %s184 = sphi 0, %s184
      %s186 = sphi 0, %s184
      %s187 = sphi 0, %s186
      %s201 = sphi 0, %s187
      %s205 = sphi 0, %s205
      %s207 = sphi 0, %s205
      %s208 = sphi 0, %s207
      %s222 = sphi 0, %s208
      %s226 = sphi 0, %s226
      %s228 = sphi 0, %s226
      %s229 = sphi 0, %s228
      %s243 = sphi 0, %s229
      %s251 = sphi 0, %s253
      %s254 = sphi 0, %s251
      %s255 = sphi 0, %s254
      %s271 = sphi 0, %s255
    $region4: #{tpu_custom_call.1} parent=1 // loop_header_branch
      %24 = sbr.rel (%p22) target = $region8
    $region5: #{tpu_custom_call.1} parent=1 // loop_body
      %s26 = ssub.s32 %s21, 1
      %s27 = ssub.s32 %s21, 2
      %s34 = sadd.s32 1, %s29
      %p35 = scmp.ge.s32.totalorder %s34, 1
      %s36 = scalar_select %p35, 0, %s34
      %s37 = sadd.s32 1, %s28
      %s38 = scalar_select %p35, %s37, %s28
      %p39 = scmp.ge.s32.totalorder %s38, 2
      %s40 = scalar_select %p39, 0, %s38
      %s41 = ssub.s32 %s28, %s40
      %s42 = ssub.s32 %s29, %s36
      %s43 = sor.u32 %s41, %s42
      %p44 = scmp.eq.s32.totalorder %s43, 0
      %s46 = sadd.s32 %s45, 1
      %s47 = scalar_select %p44, %s45, %s46
      %p50 = pneg %p44
      %p51 = scmp.eq.s32.totalorder %s21, 1
      %p52 = por %p50, %p51
      %p53 = scmp.ne.s32.totalorder %s45, %s48
      %p54 = scmp.eq.s32.totalorder %s21, 0
      %p55 = por %p53, %p54
      %p56 = scmp.ne.s32.totalorder %s45, %s48
      %p57 = scmp.eq.s32.totalorder %s26, 1
      %p58 = por %p56, %p57
      %p59 = scmp.ne.s32.totalorder %s48, %s49
      %p60 = scmp.eq.s32.totalorder %s26, 0
      %p61 = por %p59, %p60
      %p62 = scmp.ne.s32.totalorder %s48, %s49
      %p63 = scmp.eq.s32.totalorder %s27, 1
      %p64 = por %p62, %p63
      %p66 = scmp.ne.s32.totalorder %s49, %s65
      %p67 = scmp.eq.s32.totalorder %s27, 0
      %p68 = por %p66, %p67
      %s69 = ssub.s32 %s28, %s40
      %p70 = scmp.eq.s32.totalorder %s69, 0
      %s72 = sadd.s32 %s71, 1
      %s73 = scalar_select %p70, %s71, %s72
      %p76 = pneg %p70
      %p77 = scmp.eq.s32.totalorder %s21, 1
      %p78 = por %p76, %p77
      %p79 = scmp.ne.s32.totalorder %s71, %s74
      %p80 = scmp.eq.s32.totalorder %s21, 0
      %p81 = por %p79, %p80
      %p82 = scmp.ne.s32.totalorder %s71, %s74
      %p83 = scmp.eq.s32.totalorder %s26, 1
      %p84 = por %p82, %p83
      %p85 = scmp.ne.s32.totalorder %s74, %s75
      %p86 = scmp.eq.s32.totalorder %s26, 0
      %p87 = por %p85, %p86
      %p88 = scmp.ne.s32.totalorder %s74, %s75
      %p89 = scmp.eq.s32.totalorder %s27, 1
      %p90 = por %p88, %p89
      %p92 = scmp.ne.s32.totalorder %s75, %s91
      %p93 = scmp.eq.s32.totalorder %s27, 0
      %p94 = por %p92, %p93
      %s95 = ssub.s32 %s29, %s36
      %p96 = scmp.eq.s32.totalorder %s95, 0
      %s98 = sadd.s32 %s97, 1
      %s99 = scalar_select %p96, %s97, %s98
      %p102 = pneg %p96
      %p103 = scmp.eq.s32.totalorder %s21, 1
      %p104 = por %p102, %p103
      %p105 = scmp.ne.s32.totalorder %s97, %s100
      %p106 = scmp.eq.s32.totalorder %s21, 0
      %p107 = por %p105, %p106
      %p108 = scmp.ne.s32.totalorder %s97, %s100
      %p109 = scmp.eq.s32.totalorder %s26, 1
      %p110 = por %p108, %p109
      %p111 = scmp.ne.s32.totalorder %s100, %s101
      %p112 = scmp.eq.s32.totalorder %s26, 0
      %p113 = por %p111, %p112
      %p114 = scmp.ne.s32.totalorder %s100, %s101
      %p115 = scmp.eq.s32.totalorder %s27, 1
      %p116 = por %p114, %p115
      %p118 = scmp.ne.s32.totalorder %s101, %s117
      %p119 = scmp.eq.s32.totalorder %s27, 0
      %p120 = por %p118, %p119
      %s122 = sadd.s32 %s121, 1
      %p125 = scmp.eq.s32.totalorder %s21, 1
      %p126 = scmp.ne.s32.totalorder %s121, %s123
      %p127 = scmp.eq.s32.totalorder %s21, 0
      %p128 = por %p126, %p127
      %p129 = scmp.ne.s32.totalorder %s121, %s123
      %p130 = scmp.eq.s32.totalorder %s26, 1
      %p131 = por %p129, %p130
      %p132 = scmp.ne.s32.totalorder %s123, %s124
      %p133 = scmp.eq.s32.totalorder %s26, 0
      %p134 = por %p132, %p133
      %p135 = scmp.ne.s32.totalorder %s123, %s124
      %p136 = scmp.eq.s32.totalorder %s27, 1
      %p137 = por %p135, %p136
      %p139 = scmp.ne.s32.totalorder %s124, %s138
      %p140 = scmp.eq.s32.totalorder %s27, 0
      %p141 = por %p139, %p140
      %s143 = sadd.s32 %s142, 1
      %p146 = scmp.eq.s32.totalorder %s21, 1
      %p147 = scmp.ne.s32.totalorder %s142, %s144
      %p148 = scmp.eq.s32.totalorder %s21, 0
      %p149 = por %p147, %p148
      %p150 = scmp.ne.s32.totalorder %s142, %s144
      %p151 = scmp.eq.s32.totalorder %s26, 1
      %p152 = por %p150, %p151
      %p153 = scmp.ne.s32.totalorder %s144, %s145
      %p154 = scmp.eq.s32.totalorder %s26, 0
      %p155 = por %p153, %p154
      %p156 = scmp.ne.s32.totalorder %s144, %s145
      %p157 = scmp.eq.s32.totalorder %s27, 1
      %p158 = por %p156, %p157
      %p160 = scmp.ne.s32.totalorder %s145, %s159
      %p161 = scmp.eq.s32.totalorder %s27, 0
      %p162 = por %p160, %p161
      %s164 = sadd.s32 %s163, 1
      %p167 = scmp.eq.s32.totalorder %s21, 1
      %p168 = scmp.ne.s32.totalorder %s163, %s165
      %p169 = scmp.eq.s32.totalorder %s21, 0
      %p170 = por %p168, %p169
      %p171 = scmp.ne.s32.totalorder %s163, %s165
      %p172 = scmp.eq.s32.totalorder %s26, 1
      %p173 = por %p171, %p172
      %p174 = scmp.ne.s32.totalorder %s165, %s166
      %p175 = scmp.eq.s32.totalorder %s26, 0
      %p176 = por %p174, %p175
      %p177 = scmp.ne.s32.totalorder %s165, %s166
      %p178 = scmp.eq.s32.totalorder %s27, 1
      %p179 = por %p177, %p178
      %p181 = scmp.ne.s32.totalorder %s166, %s180
      %p182 = scmp.eq.s32.totalorder %s27, 0
      %p183 = por %p181, %p182
      %s185 = sadd.s32 %s184, 1
      %p188 = scmp.eq.s32.totalorder %s21, 1
      %p189 = scmp.ne.s32.totalorder %s184, %s186
      %p190 = scmp.eq.s32.totalorder %s21, 0
      %p191 = por %p189, %p190
      %p192 = scmp.ne.s32.totalorder %s184, %s186
      %p193 = scmp.eq.s32.totalorder %s26, 1
      %p194 = por %p192, %p193
      %p195 = scmp.ne.s32.totalorder %s186, %s187
      %p196 = scmp.eq.s32.totalorder %s26, 0
      %p197 = por %p195, %p196
      %p198 = scmp.ne.s32.totalorder %s186, %s187
      %p199 = scmp.eq.s32.totalorder %s27, 1
      %p200 = por %p198, %p199
      %p202 = scmp.ne.s32.totalorder %s187, %s201
      %p203 = scmp.eq.s32.totalorder %s27, 0
      %p204 = por %p202, %p203
      %s206 = sadd.s32 %s205, 1
      %p209 = scmp.eq.s32.totalorder %s21, 1
      %p210 = scmp.ne.s32.totalorder %s205, %s207
      %p211 = scmp.eq.s32.totalorder %s21, 0
      %p212 = por %p210, %p211
      %p213 = scmp.ne.s32.totalorder %s205, %s207
      %p214 = scmp.eq.s32.totalorder %s26, 1
      %p215 = por %p213, %p214
      %p216 = scmp.ne.s32.totalorder %s207, %s208
      %p217 = scmp.eq.s32.totalorder %s26, 0
      %p218 = por %p216, %p217
      %p219 = scmp.ne.s32.totalorder %s207, %s208
      %p220 = scmp.eq.s32.totalorder %s27, 1
      %p221 = por %p219, %p220
      %p223 = scmp.ne.s32.totalorder %s208, %s222
      %p224 = scmp.eq.s32.totalorder %s27, 0
      %p225 = por %p223, %p224
      %s227 = sadd.s32 %s226, 1
      %p230 = scmp.eq.s32.totalorder %s21, 1
      %p231 = scmp.ne.s32.totalorder %s226, %s228
      %p232 = scmp.eq.s32.totalorder %s21, 0
      %p233 = por %p231, %p232
      %p234 = scmp.ne.s32.totalorder %s226, %s228
      %p235 = scmp.eq.s32.totalorder %s26, 1
      %p236 = por %p234, %p235
      %p237 = scmp.ne.s32.totalorder %s228, %s229
      %p238 = scmp.eq.s32.totalorder %s26, 0
      %p239 = por %p237, %p238
      %p240 = scmp.ne.s32.totalorder %s228, %s229
      %p241 = scmp.eq.s32.totalorder %s27, 1
      %p242 = por %p240, %p241
      %p244 = scmp.ne.s32.totalorder %s229, %s243
      %p245 = scmp.eq.s32.totalorder %s27, 0
      %p246 = por %p244, %p245
      %s247 = ssub.s32 %s28, %s40
      %s248 = ssub.s32 %s29, %s36
      %s249 = sor.u32 %s247, %s248
      %p250 = scmp.eq.s32.totalorder %s249, 0
      %s252 = sadd.s32 %s251, 1
      %s253 = scalar_select %p250, %s251, %s252
      %p256 = pneg %p250
      %p257 = scmp.eq.s32.totalorder %s21, 1
      %p258 = por %p256, %p257
      %p259 = scmp.ne.s32.totalorder %s251, %s254
      %p260 = scmp.eq.s32.totalorder %s21, 0
      %p261 = por %p259, %p260
      %p262 = scmp.ne.s32.totalorder %s251, %s254
      %p263 = scmp.eq.s32.totalorder %s26, 1
      %p264 = por %p262, %p263
      %p265 = scmp.ne.s32.totalorder %s254, %s255
      %p266 = scmp.eq.s32.totalorder %s26, 0
      %p267 = por %p265, %p266
      %p268 = scmp.ne.s32.totalorder %s254, %s255
      %p269 = scmp.eq.s32.totalorder %s27, 1
      %p270 = por %p268, %p269
      %p272 = scmp.ne.s32.totalorder %s255, %s271
      %p273 = scmp.eq.s32.totalorder %s27, 0
      %p274 = por %p272, %p273
      %p275 = scmp.le.s32.totalorder 1, %s21
      %p276 = scmp.lt.s32.totalorder %s21, 3
      %p277 = pnand %p275, %p276
      %p278 = pneg %p277
      // Predicated region
      $region9: #{tpu_custom_call.1} parent=5 // pred_check
        _
      $region10: #{tpu_custom_call.1} parent=5 // pred_check_branch
        %280 = sbr.rel (%p277) target = $region12
      $region11: #{tpu_custom_call.1} parent=5 // pred_region
        %s281 = ssub.s32 %s21, 1
        // Predicated region
        $region13: #{tpu_custom_call.1} parent=11 // pred_check
          %p282 = pneg %p113
        $region14: #{tpu_custom_call.1} parent=11 // pred_check_branch
          %284 = sbr.rel (%p282) target = $region16
        $region15: #{tpu_custom_call.1} parent=11 // pred_region
          %s285 = smul.u32 2, %s31
          %s287 = ssub.s32 2048, 2048
          %288 = vsyncadd [#allocation4], %s287
          %s289 = smul.addr %s285, 128
          %s290 = scalar_lea.hbm %s2, %s289
          %s291 = sshll.u32 [#allocation3], 4
          %s292 = int_to_ptr.vmem [resolvable:$true] %s291
          %297 = dma.hbm_to_vmem [thread:$0]  %s290, 2048, %s292, [#allocation4], 256, 256, 16
        $region16: #{tpu_custom_call.1} parent=11 // pred_fallthru
          _
        // Predicated region
        $region17: #{tpu_custom_call.1} parent=11 // pred_check
          %p298 = pneg %p134
        $region18: #{tpu_custom_call.1} parent=11 // pred_check_branch
          %300 = sbr.rel (%p298) target = $region20
        $region19: #{tpu_custom_call.1} parent=11 // pred_region
          _
        $region20: #{tpu_custom_call.1} parent=11 // pred_fallthru
          _
        // Predicated region
        $region21: #{tpu_custom_call.1} parent=11 // pred_check
          %p301 = pneg %p155
        $region22: #{tpu_custom_call.1} parent=11 // pred_check_branch
          %303 = sbr.rel (%p301) target = $region24
        $region23: #{tpu_custom_call.1} parent=11 // pred_region
          _
        $region24: #{tpu_custom_call.1} parent=11 // pred_fallthru
          _
        // Predicated region
        $region25: #{tpu_custom_call.1} parent=11 // pred_check
          %p304 = pneg %p176
        $region26: #{tpu_custom_call.1} parent=11 // pred_check_branch
          %306 = sbr.rel (%p304) target = $region28
        $region27: #{tpu_custom_call.1} parent=11 // pred_region
          _
        $region28: #{tpu_custom_call.1} parent=11 // pred_fallthru
          _
        // Predicated region
        $region29: #{tpu_custom_call.1} parent=11 // pred_check
          %p307 = pneg %p197
        $region30: #{tpu_custom_call.1} parent=11 // pred_check_branch
          %309 = sbr.rel (%p307) target = $region32
        $region31: #{tpu_custom_call.1} parent=11 // pred_region
          _
        $region32: #{tpu_custom_call.1} parent=11 // pred_fallthru
          _
        // Predicated region
        $region33: #{tpu_custom_call.1} parent=11 // pred_check
          %p310 = pneg %p218
        $region34: #{tpu_custom_call.1} parent=11 // pred_check_branch
          %312 = sbr.rel (%p310) target = $region36
        $region35: #{tpu_custom_call.1} parent=11 // pred_region
          _
        $region36: #{tpu_custom_call.1} parent=11 // pred_fallthru
          _
        // Predicated region
        $region37: #{tpu_custom_call.1} parent=11 // pred_check
          %p313 = pneg %p239
        $region38: #{tpu_custom_call.1} parent=11 // pred_check_branch
          %315 = sbr.rel (%p313) target = $region40
        $region39: #{tpu_custom_call.1} parent=11 // pred_region
          _
        $region40: #{tpu_custom_call.1} parent=11 // pred_fallthru
          _
      $region12: #{tpu_custom_call.1} parent=5 // pred_fallthru
        _
      %p316 = scmp.lt.s32.totalorder %s21, 2
      // Predicated region
      $region41: #{tpu_custom_call.1} parent=5 // pred_check
        %p317 = pneg %p316
      $region42: #{tpu_custom_call.1} parent=5 // pred_check_branch
        %319 = sbr.rel (%p317) target = $region44
      $region43: #{tpu_custom_call.1} parent=5 // pred_region
        // Predicated region
        $region45: #{tpu_custom_call.1} parent=43 // pred_check
          %p320 = pneg %p55
        $region46: #{tpu_custom_call.1} parent=43 // pred_check_branch
          %322 = sbr.rel (%p320) target = $region48
        $region47: #{tpu_custom_call.1} parent=43 // pred_region
          %s323 = smul.u32 2, %s29
          %p324 = scmp.lt.s32.totalorder %s28, 1
          %s325 = scalar_select %p324, %s28, 1
          %p326 = scmp.lt.s32.totalorder %s323, 1
          %s327 = scalar_select %p326, %s323, 1
          %s328 = smul.addr %s325, 2
          %s329 = sadd.s32 %s327, %s328
          %s330 = smul.addr %s329, 4
          %s331 = scalar_lea.vmem %s0, %s330
          %s332 = smul.u32 2, %s29
        $region48: #{tpu_custom_call.1} parent=43 // pred_fallthru
          _
        // Predicated region
        $region49: #{tpu_custom_call.1} parent=43 // pred_check
          %p333 = pneg %p81
        $region50: #{tpu_custom_call.1} parent=43 // pred_check_branch
          %335 = sbr.rel (%p333) target = $region52
        $region51: #{tpu_custom_call.1} parent=43 // pred_region
          %p336 = scmp.lt.s32.totalorder %s28, 1
          %s337 = scalar_select %p336, %s28, 1
          %s338 = smul.addr %s337, 8
          %s339 = scalar_lea.vmem %s1, %s338
        $region52: #{tpu_custom_call.1} parent=43 // pred_fallthru
          _
      $region44: #{tpu_custom_call.1} parent=5 // pred_fallthru
        _
      %p340 = scmp.le.s32.totalorder 1, %s21
      %p341 = scmp.lt.s32.totalorder %s21, 3
      %p342 = pnand %p340, %p341
      %p343 = pneg %p342
      // Predicated region
      $region53: #{tpu_custom_call.1} parent=5 // pred_check
        _
      $region54: #{tpu_custom_call.1} parent=5 // pred_check_branch
        %345 = sbr.rel (%p342) target = $region56
      $region55: #{tpu_custom_call.1} parent=5 // pred_region
        %s346 = ssub.s32 %s21, 1
        // Predicated region
        $region57: #{tpu_custom_call.1} parent=55 // pred_check
          %p347 = pneg %p113
        $region58: #{tpu_custom_call.1} parent=55 // pred_check_branch
          %349 = sbr.rel (%p347) target = $region60
        $region59: #{tpu_custom_call.1} parent=55 // pred_region
          %350 = dma.done [#allocation4], 2048
        $region60: #{tpu_custom_call.1} parent=55 // pred_fallthru
          _
        %s351 = smul.u32 2, %s31
        %p352 = scmp.lt.s32.totalorder %s30, 1
        %s353 = scalar_select %p352, %s30, 1
        %p354 = scmp.lt.s32.totalorder %s351, 1
        %s355 = scalar_select %p354, %s351, 1
        %s356 = smul.addr %s353, 2
        %s357 = sadd.s32 %s355, %s356
        %s358 = smul.addr %s357, 4
        %s359 = scalar_lea.vmem %s0, %s358
        %p360 = pneg %p61
        %p361 = pneg %p58
        %p362 = scmp.lt.s32.totalorder %s30, 1
        %s363 = scalar_select %p362, %s30, 1
        %s364 = smul.addr %s363, 8
        %s365 = scalar_lea.vmem %s1, %s364
        %p366 = pneg %p87
        %p367 = pneg %p84
        %p368 = pneg %p113
        %p369 = pneg %p110
        %p370 = pneg %p134
        %p371 = pneg %p131
        %p372 = pneg %p155
        %p373 = pneg %p152
        %p374 = pneg %p176
        %p375 = pneg %p173
        %p376 = pneg %p197
        %p377 = pneg %p194
        %p378 = pneg %p218
        %p379 = pneg %p215
        %p380 = pneg %p239
        %p381 = pneg %p236
        %p382 = pneg %p267
        %p383 = pneg %p264
        %s384 = sand.u32 %s254, 1
        %s385 = scalar_lea.sflag [#allocation5], %s384
        %s386 = sand.u32 %s254, 1
        %s387 = smul.addr %s386, 4
        %s388 = scalar_lea.vmem [#allocation6], %s387
        %s389 = smul.u32 2, %s31
        %p390 = scmp.lt.s32.totalorder %s30, 1
        %s391 = scalar_select %p390, %s30, 1
        %p392 = scmp.lt.s32.totalorder %s389, 1
        %s393 = scalar_select %p392, %s389, 1
        %s394 = smul.addr %s391, 2
        %s395 = sadd.s32 %s393, %s394
        %s396 = smul.addr %s395, 4
        %s397 = scalar_lea.vmem %s0, %s396
        %s398 = smul.u32 2, %s31
        %p399 = scmp.lt.s32.totalorder %s30, 1
        %s400 = scalar_select %p399, %s30, 1
        %s401 = smul.addr %s400, 8
        %s402 = scalar_lea.vmem %s1, %s401
        %s403 = smul.u32 2, %s31
        %s404 = smul.u32 2, %s31
        %v405 = vld [vmem:[%s397] sm:$0xff]
        %v406 = vld [vmem:[%s402] sm:$0xff]
        %v407 = vld [vmem:[%s3] sm:$0xff]
        %v408 = vld [vmem:[%s3 + $0x8] sm:$0xff]
        %v410 = vcombine.high %v405, %v405
        %vm411 = vcmask 31744
        %v413 = vsel %vm411, %v407, 0
        %v416 = vsel %vm411, %v408, 0
        %vm418 = vcmask 1043456
        %v419 = vsel %vm418, %v405, 0
        %v421 = vsel %vm418, %v410, 0
        %423 = vmatprep.subr.mxu0 %v421
        %424 = vmatpush1.msra.mxu0 %v419
        %425 = vmatprep.subr.mxu0 0.0
        %426 = vmatpush1.msra.mxu0 0.0
        %427 = vmatprep.subr.mxu0 0.0
        %428 = vmatpush1.msra.mxu0 0.0
        %429 = vmatprep.subr.mxu0 0.0
        %430 = vmatpush1.msra.mxu0 0.0
        %431 = vmatprep.subr.mxu0 0.0
        %432 = vmatpush1.msra.mxu0 0.0
        %433 = vmatprep.subr.mxu0 0.0
        %434 = vmatpush1.msra.mxu0 0.0
        %435 = vmatprep.subr.mxu0 0.0
        %436 = vmatpush1.msra.mxu0 0.0
        %437 = vmatprep.subr.mxu0 0.0
        %438 = vmatpush1.msra.mxu0 0.0
        %439 = vmatprep.subr.mxu0 0.0
        %440 = vmatpush1.msra.mxu0 0.0
        %441 = vmatprep.subr.mxu0 0.0
        %442 = vmatpush1.msra.mxu0 0.0
        %443 = vmatprep.subr.mxu0 0.0
        %444 = vmatpush1.msra.mxu0 0.0
        %445 = vmatprep.subr.mxu0 0.0
        %446 = vmatpush1.msra.mxu0 0.0
        %447 = vmatprep.subr.mxu0 0.0
        %448 = vmatpush1.msra.mxu0 0.0
        %449 = vmatprep.subr.mxu0 0.0
        %450 = vmatpush1.msra.mxu0 0.0
        %451 = vmatprep.subr.mxu0 0.0
        %452 = vmatpush1.msra.mxu0 0.0
        %453 = vmatprep.subr.mxu0 0.0
        %454 = vmatpush1.msra.mxu0 0.0
        %455 = vmatprep.subr.mxu0 0.0
        %456 = vmatpush1.msra.mxu0 0.0
        %457 = vmatprep.subr.mxu0 0.0
        %458 = vmatpush1.msra.mxu0 0.0
        %459 = vmatprep.subr.mxu0 0.0
        %460 = vmatpush1.msra.mxu0 0.0
        %461 = vmatprep.subr.mxu0 0.0
        %462 = vmatpush1.msra.mxu0 0.0
        %463 = vmatprep.subr.mxu0 0.0
        %464 = vmatpush1.msra.mxu0 0.0
        %465 = vmatprep.subr.mxu0 0.0
        %466 = vmatpush1.msra.mxu0 0.0
        %467 = vmatprep.subr.mxu0 0.0
        %468 = vmatpush1.msra.mxu0 0.0
        %469 = vmatprep.subr.mxu0 0.0
        %470 = vmatpush1.msra.mxu0 0.0
        %471 = vmatprep.subr.mxu0 0.0
        %472 = vmatpush1.msra.mxu0 0.0
        %473 = vmatprep.subr.mxu0 0.0
        %474 = vmatpush1.msra.mxu0 0.0
        %475 = vmatprep.subr.mxu0 0.0
        %476 = vmatpush1.msra.mxu0 0.0
        %477 = vmatprep.subr.mxu0 0.0
        %478 = vmatpush1.msra.mxu0 0.0
        %479 = vmatprep.subr.mxu0 0.0
        %480 = vmatpush1.msra.mxu0 0.0
        %481 = vmatprep.subr.mxu0 0.0
        %482 = vmatpush1.msra.mxu0 0.0
        %483 = vmatprep.subr.mxu0 0.0
        %484 = vmatpush1.msra.mxu0 0.0
        %485 = vmatprep.subr.mxu0 0.0
        %486 = vmatpush1.msra.mxu0 0.0
        %487 = vmatprep.mubr.f32.mxu0 0.0
        %488 = vmatmul.mubr.f32.gmra.mrb[0].mxu0 %v413
        %v489 = vpop.f32.mrb[0].mxu0
        %v490 = vadd.f32 0.0, %v489
        %v491 = vpop.f32.mrb[0].mxu0
        %v492 = vadd.f32 0.0, %v491
        %493 = vmatprep.mubr.f32.mxu0 0.0
        %494 = vmatmul.mubr.f32.gmra.mrb[0].mxu0 %v416
        %v495 = vpop.f32.mrb[0].mxu0
        %v496 = vadd.f32 0.0, %v495
        %v497 = vpop.f32.mrb[0].mxu0
        %v498 = vadd.f32 0.0, %v497
        %499 = vdwg.mxu0
        %v500 = vld [vmem:[%s4] sm:$0x3]
        %v501 = vld [vmem:[%s5] sm:$0x3]
        %503 = vset.pattern.permute.xlu0 0
        %504 = vperm.xlu0 %503, %v501
        %v505 = vpop.permute.xlu0 %504
        %vm507 = vcmask 64512
        %v509 = vsel %vm507, %v500, 0
        %511 = vmatprep.subr.mxu0 0.0
        %512 = vmatpush1.msra.mxu0 %v406
        %513 = vmatprep.subr.mxu0 0.0
        %514 = vmatpush1.msra.mxu0 0.0
        %515 = vmatprep.subr.mxu0 0.0
        %516 = vmatpush1.msra.mxu0 0.0
        %517 = vmatprep.subr.mxu0 0.0
        %518 = vmatpush1.msra.mxu0 0.0
        %519 = vmatprep.subr.mxu0 0.0
        %520 = vmatpush1.msra.mxu0 0.0
        %521 = vmatprep.subr.mxu0 0.0
        %522 = vmatpush1.msra.mxu0 0.0
        %523 = vmatprep.subr.mxu0 0.0
        %524 = vmatpush1.msra.mxu0 0.0
        %525 = vmatprep.subr.mxu0 0.0
        %526 = vmatpush1.msra.mxu0 0.0
        %527 = vmatprep.subr.mxu0 0.0
        %528 = vmatpush1.msra.mxu0 0.0
        %529 = vmatprep.subr.mxu0 0.0
        %530 = vmatpush1.msra.mxu0 0.0
        %531 = vmatprep.subr.mxu0 0.0
        %532 = vmatpush1.msra.mxu0 0.0
        %533 = vmatprep.subr.mxu0 0.0
        %534 = vmatpush1.msra.mxu0 0.0
        %535 = vmatprep.subr.mxu0 0.0
        %536 = vmatpush1.msra.mxu0 0.0
        %537 = vmatprep.subr.mxu0 0.0
        %538 = vmatpush1.msra.mxu0 0.0
        %539 = vmatprep.subr.mxu0 0.0
        %540 = vmatpush1.msra.mxu0 0.0
        %541 = vmatprep.subr.mxu0 0.0
        %542 = vmatpush1.msra.mxu0 0.0
        %543 = vmatprep.subr.mxu0 0.0
        %544 = vmatpush1.msra.mxu0 0.0
        %545 = vmatprep.subr.mxu0 0.0
        %546 = vmatpush1.msra.mxu0 0.0
        %547 = vmatprep.subr.mxu0 0.0
        %548 = vmatpush1.msra.mxu0 0.0
        %549 = vmatprep.subr.mxu0 0.0
        %550 = vmatpush1.msra.mxu0 0.0
        %551 = vmatprep.subr.mxu0 0.0
        %552 = vmatpush1.msra.mxu0 0.0
        %553 = vmatprep.subr.mxu0 0.0
        %554 = vmatpush1.msra.mxu0 0.0
        %555 = vmatprep.subr.mxu0 0.0
        %556 = vmatpush1.msra.mxu0 0.0
        %557 = vmatprep.subr.mxu0 0.0
        %558 = vmatpush1.msra.mxu0 0.0
        %559 = vmatprep.subr.mxu0 0.0
        %560 = vmatpush1.msra.mxu0 0.0
        %561 = vmatprep.subr.mxu0 0.0
        %562 = vmatpush1.msra.mxu0 0.0
        %563 = vmatprep.subr.mxu0 0.0
        %564 = vmatpush1.msra.mxu0 0.0
        %565 = vmatprep.subr.mxu0 0.0
        %566 = vmatpush1.msra.mxu0 0.0
        %567 = vmatprep.subr.mxu0 0.0
        %568 = vmatpush1.msra.mxu0 0.0
        %569 = vmatprep.subr.mxu0 0.0
        %570 = vmatpush1.msra.mxu0 0.0
        %571 = vmatprep.subr.mxu0 0.0
        %572 = vmatpush1.msra.mxu0 0.0
        %573 = vmatprep.subr.mxu0 0.0
        %574 = vmatpush1.msra.mxu0 0.0
        %575 = vmatprep.mubr.f32.mxu0 0.0
        %576 = vmatmul.mubr.f32.gmra.mrb[0].mxu0 %v509
        %v577 = vpop.f32.mrb[0].mxu0
        %v578 = vadd.f32 %v505, %v577
        %v579 = vpop.f32.mrb[0].mxu0
        %580 = vdwg.mxu0
        %v581 = vld [vmem:[#allocation3] sm:$0xff]
        %v582 = vld [vmem:[#allocation3 + $0x8] sm:$0xff]
        %v583 = vld [vmem:[#allocation3 + $0x10] sm:$0xff]
        %v584 = vld [vmem:[#allocation3 + $0x18] sm:$0xff]
        %v585 = vld [vmem:[#allocation3 + $0x20] sm:$0xff]
        %v586 = vld [vmem:[#allocation3 + $0x28] sm:$0xff]
        %v587 = vld [vmem:[#allocation3 + $0x30] sm:$0xff]
        %v588 = vld [vmem:[#allocation3 + $0x38] sm:$0xff]
        %v589 = vld [vmem:[#allocation3 + $0x40] sm:$0xff]
        %v590 = vld [vmem:[#allocation3 + $0x48] sm:$0xff]
        %v591 = vld [vmem:[#allocation3 + $0x50] sm:$0xff]
        %v592 = vld [vmem:[#allocation3 + $0x58] sm:$0xff]
        %v593 = vld [vmem:[#allocation3 + $0x60] sm:$0xff]
        %v594 = vld [vmem:[#allocation3 + $0x68] sm:$0xff]
        %v595 = vld [vmem:[#allocation3 + $0x70] sm:$0xff]
        %v596 = vld [vmem:[#allocation3 + $0x78] sm:$0xff]
        %vm597 = vcmask 523264
        %v599 = vsel %vm597, %v578, 0
        %601 = vmatprep.subr.mxu0 %v582
        %602 = vmatpush1.msra.mxu0 %v581
        %603 = vmatprep.subr.mxu0 %v584
        %604 = vmatpush1.msra.mxu0 %v583
        %605 = vmatprep.subr.mxu0 %v586
        %606 = vmatpush1.msra.mxu0 %v585
        %607 = vmatprep.subr.mxu0 %v588
        %608 = vmatpush1.msra.mxu0 %v587
        %609 = vmatprep.subr.mxu0 %v590
        %610 = vmatpush1.msra.mxu0 %v589
        %611 = vmatprep.subr.mxu0 %v592
        %612 = vmatpush1.msra.mxu0 %v591
        %613 = vmatprep.subr.mxu0 %v594
        %614 = vmatpush1.msra.mxu0 %v593
        %615 = vmatprep.subr.mxu0 %v596
        %616 = vmatpush1.msra.mxu0 %v595
        %617 = vmatprep.subr.mxu0 0.0
        %618 = vmatpush1.msra.mxu0 0.0
        %619 = vmatprep.subr.mxu0 0.0
        %620 = vmatpush1.msra.mxu0 0.0
        %621 = vmatprep.subr.mxu0 0.0
        %622 = vmatpush1.msra.mxu0 0.0
        %623 = vmatprep.subr.mxu0 0.0
        %624 = vmatpush1.msra.mxu0 0.0
        %625 = vmatprep.subr.mxu0 0.0
        %626 = vmatpush1.msra.mxu0 0.0
        %627 = vmatprep.subr.mxu0 0.0
        %628 = vmatpush1.msra.mxu0 0.0
        %629 = vmatprep.subr.mxu0 0.0
        %630 = vmatpush1.msra.mxu0 0.0
        %631 = vmatprep.subr.mxu0 0.0
        %632 = vmatpush1.msra.mxu0 0.0
        %633 = vmatprep.subr.mxu0 0.0
        %634 = vmatpush1.msra.mxu0 0.0
        %635 = vmatprep.subr.mxu0 0.0
        %636 = vmatpush1.msra.mxu0 0.0
        %637 = vmatprep.subr.mxu0 0.0
        %638 = vmatpush1.msra.mxu0 0.0
        %639 = vmatprep.subr.mxu0 0.0
        %640 = vmatpush1.msra.mxu0 0.0
        %641 = vmatprep.subr.mxu0 0.0
        %642 = vmatpush1.msra.mxu0 0.0
        %643 = vmatprep.subr.mxu0 0.0
        %644 = vmatpush1.msra.mxu0 0.0
        %645 = vmatprep.subr.mxu0 0.0
        %646 = vmatpush1.msra.mxu0 0.0
        %647 = vmatprep.subr.mxu0 0.0
        %648 = vmatpush1.msra.mxu0 0.0
        %649 = vmatprep.subr.mxu0 0.0
        %650 = vmatpush1.msra.mxu0 0.0
        %651 = vmatprep.subr.mxu0 0.0
        %652 = vmatpush1.msra.mxu0 0.0
        %653 = vmatprep.subr.mxu0 0.0
        %654 = vmatpush1.msra.mxu0 0.0
        %655 = vmatprep.subr.mxu0 0.0
        %656 = vmatpush1.msra.mxu0 0.0
        %657 = vmatprep.subr.mxu0 0.0
        %658 = vmatpush1.msra.mxu0 0.0
        %659 = vmatprep.subr.mxu0 0.0
        %660 = vmatpush1.msra.mxu0 0.0
        %661 = vmatprep.subr.mxu0 0.0
        %662 = vmatpush1.msra.mxu0 0.0
        %663 = vmatprep.subr.mxu0 0.0
        %664 = vmatpush1.msra.mxu0 0.0
        %665 = vmatprep.mubr.f32.mxu0 0.0
        %666 = vmatmul.mubr.f32.gmra.mrb[0].mxu0 %v599
        %v667 = vpop.f32.mrb[0].mxu0
        %v668 = vadd.f32 0.0, %v667
        %v669 = vpop.f32.mrb[0].mxu0
        %v670 = vadd.f32 0.0, %v669
        %671 = vdwg.mxu0
        %v672 = vadd.f32 %v490, %v668
        %v673 = vadd.f32 %v492, %v670
        %v674 = vmax.f32 %v672, 0.0
        %v675 = vmax.f32 %v673, 0.0
        %v676 = vld [vmem:[%s6] sm:$0x3]
        %678 = vset.pattern.permute.xlu0 0
        %679 = vperm.xlu0 %678, %v676
        %v680 = vpop.permute.xlu0 %679
        %v682 = vmul.f32 %v674, %v680
        %v683 = vmul.f32 %v675, %v680
        %vm684 = vcmask 1041408
        %v685 = vsel %vm684, %v682, 0.0
        %v686 = vrot.slane %v685, 4
        %v687 = vadd.f32 %v685, %v686
        %v688 = vrot.slane %v687, 2
        %v689 = vadd.f32 %v687, %v688
        %v690 = vrot.slane %v689, 1
        %v691 = vadd.f32 %v689, %v690
        %v692 = vsel %vm684, %v683, 0.0
        %v693 = vrot.slane %v692, 4
        %v694 = vadd.f32 %v692, %v693
        %v695 = vrot.slane %v694, 2
        %v696 = vadd.f32 %v694, %v695
        %v697 = vrot.slane %v696, 1
        %v698 = vadd.f32 %v696, %v697
        %v699 = vld [vmem:[#allocation2] sm:$0x1]
        %701 = vset.pattern.permute.xlu0 0
        %702 = vperm.xlu0 %701, %v699
        %v703 = vpop.permute.xlu0 %702
        %v705 = vlaneseq
        %v706 = vshrl.u32 %v705, 7
        %v707 = vsub.s32 0, %v706
        %v708 = vrot.slane %v703, %v707
        %v709 = vadd.f32 %v691, %v708
        %v710 = vadd.f32 %v698, %v708
        %v711 = vxor.u32 %v709, 2147483648
        %v712 = vxor.u32 %v710, 2147483648
        %v713 = vmul.f32 %v711, 1.442695
        %v714 = vpow.pop %v713
        %v715 = vmul.f32 %v712, 1.442695
        %v716 = vpow.pop %v715
        %v717 = vadd.f32 %v714, 1.0
        %v718 = vadd.f32 %v716, 1.0
        %v719 = vrcp.pop %v717
        %v720 = vmul.f32 1.0, %v719
        %v721 = vrcp.pop %v718
        %v722 = vmul.f32 1.0, %v721
        %v723 = vmul.f32 %v496, %v720
        %v724 = vmul.f32 %v498, %v722
        %v725 = vld [vmem:[%s8] sm:$0x3]
        %727 = vset.pattern.permute.xlu0 0
        %728 = vperm.xlu0 %727, %v725
        %v729 = vpop.permute.xlu0 %728
        %v731 = vadd.f32 %v723, %v729
        %v732 = vadd.f32 %v724, %v729
        %v735 = vcombine.low %v731, %v732
        %v737 = vunpack.c.l.s4 1983009808
        %v738 = vunpack.c.0.s8 %v737
        %v739 = vlaneseq
        %v740 = vshrl.u32 %v739, 7
        %v741 = vsub.s32 %v738, %v740
        %v742 = vrot.slane %v735, %v741
        %744 = vst [vmem:[%s388] sm:$0xf] %v742
        %s745 = sand.u32 %s254, 1
        %s746 = scalar_lea.sflag [#allocation5], %s745
        %s747 = sand.u32 %s254, 1
        %s748 = smul.addr %s747, 4
        %s749 = scalar_lea.vmem [#allocation6], %s748
        // Predicated region
        $region61: #{tpu_custom_call.1} parent=55 // pred_check
          %p750 = pneg %p264
        $region62: #{tpu_custom_call.1} parent=55 // pred_check_branch
          %752 = sbr.rel (%p750) target = $region64
        $region63: #{tpu_custom_call.1} parent=55 // pred_region
          %s753 = smul.u32 2, %s31
          %s755 = ssub.s32 64, 64
          %756 = vsyncadd %s746, %s755
          %s757 = smul.addr %s30, 2
          %s758 = sadd.s32 %s753, %s757
          %s759 = smul.addr %s758, 32
          %s760 = scalar_lea.hbm %s9, %s759
          %s762 = sshll.u32 %s749, 4
          %s763 = int_to_ptr.vmem [resolvable:$true] %s762
          %765 = dma.vmem_to_hbm [thread:$0]  %s763, 64, %s760, %s746
        $region64: #{tpu_custom_call.1} parent=55 // pred_fallthru
          _
      $region56: #{tpu_custom_call.1} parent=5 // pred_fallthru
        _
      %p766 = scmp.le.s32.totalorder 2, %s21
      // Predicated region
      $region65: #{tpu_custom_call.1} parent=5 // pred_check
        %p767 = pneg %p766
      $region66: #{tpu_custom_call.1} parent=5 // pred_check_branch
        %769 = sbr.rel (%p767) target = $region68
      $region67: #{tpu_custom_call.1} parent=5 // pred_region
        %s770 = ssub.s32 %s21, 2
        // Predicated region
        $region69: #{tpu_custom_call.1} parent=67 // pred_check
          %p771 = pneg %p270
        $region70: #{tpu_custom_call.1} parent=67 // pred_check_branch
          %773 = sbr.rel (%p771) target = $region72
        $region71: #{tpu_custom_call.1} parent=67 // pred_region
          %s774 = sand.u32 %s255, 1
          %s775 = scalar_lea.sflag [#allocation5], %s774
          %s776 = sand.u32 %s255, 1
          %s777 = smul.addr %s776, 4
          %s778 = scalar_lea.vmem [#allocation6], %s777
          %779 = dma.done %s775, 64
        $region72: #{tpu_custom_call.1} parent=67 // pred_fallthru
          _
      $region68: #{tpu_custom_call.1} parent=5 // pred_fallthru
        _
    $region6: #{tpu_custom_call.1} parent=1 // loop_footer
      %s25 = sadd.s32 1, %s21
    $region7: #{tpu_custom_call.1} parent=1 // loop_footer_branch
      %20 = sbr.rel target = $region3
    $region8: #{tpu_custom_call.1} parent=1 // loop_exit
      _
    %780 = vsyncpa [#allocation4], 1
    %s781 = scalar_lea.sflag [#allocation4], 1
    %782 = vsyncpa %s781, 1
    %783 = vsyncpa [#allocation5], 1
    %s784 = scalar_lea.sflag [#allocation5], 1
    %785 = vsyncpa %s784, 1

</llo_original>
